<compile_context>
chip_gen: v6e
topology: v6e:2x2x1
jax: 0.10.0
libtpu: 0.0.40
codegen_flags: <defaults>
</compile_context>

<pallas_src>
import functools

import jax
import jax.numpy as jnp
from jax.experimental import pallas as pl
from jax.experimental.pallas import tpu as pltpu

H1, H2 = 128, 256   # hidden widths from the PyTorch module
LANE = 128          # TPU lane width


def _round_up(x, m):
    return (x + m - 1) // m * m


def dqn_kernel(x_ref, w1_ref, b1_ref, w2_ref, b2_ref, w3_ref, b3_ref, o_ref,
               *, n_actions):
    # Layer 1: x arrives f32; cast to bf16 in-kernel, (Bt,n_obs)@(n_obs,128)
    # -> f32 acc, + f32 bias, ReLU.
    x = x_ref[...].astype(jnp.bfloat16)
    h1 = jnp.dot(x, w1_ref[...], preferred_element_type=jnp.float32)
    h1 = jnp.maximum(h1 + b1_ref[...], 0.0)
    # Layer 2: (Bt,128)bf16 @ (128,256)bf16 -> f32 acc, + f32 bias, ReLU.
    h2 = jnp.dot(h1.astype(jnp.bfloat16), w2_ref[...],
                 preferred_element_type=jnp.float32)
    h2 = jnp.maximum(h2 + b2_ref[...], 0.0)
    # Layer 3: lane-padded weight (256, n_lane) keeps the MXU N dense, but
    # only the real n_actions columns (+ unpadded f32 bias) are stored to HBM.
    q = jnp.dot(h2.astype(jnp.bfloat16), w3_ref[...],
                preferred_element_type=jnp.float32)
    o_ref[...] = (q[:, :n_actions] + b3_ref[...]).astype(o_ref.dtype)


def dqn_forward(x, params, *, b_tile=512):
    """Run the full DQN MLP in one (batch-tiled) Pallas kernel call.

    x: (B, n_observations) float32
    params: dict with w1 (n_obs,128), b1 (1,128), w2 (128,256), b2 (1,256),
            w3 (256,n_actions), b3 (1,n_actions), all float32.
    Returns (B, n_actions) float32 Q-values.
    """
    B, n_obs = x.shape
    n_actions = params["w3"].shape[1]

    # bf16 weights for the MXU; f32 biases added on the f32 accumulate path.
    w1 = params["w1"].astype(jnp.bfloat16)
    w2 = params["w2"].astype(jnp.bfloat16)
    b1 = params["b1"].astype(jnp.float32)
    b2 = params["b2"].astype(jnp.float32)
    b3 = params["b3"].astype(jnp.float32)

    # Lane-pad ONLY the layer-3 weight (MXU-side); HBM output stays narrow.
    n_lane = _round_up(max(n_actions, LANE), LANE)
    w3p = jnp.zeros((H2, n_lane), jnp.bfloat16).at[:, :n_actions].set(
        params["w3"].astype(jnp.bfloat16))

    # Batch tiling: multiple of 8 sublanes when B >= 8; for B < 8 the block
    # equals the full batch (allowed: block dim == array dim).  No padding of
    # x -- a partial last tile is masked by Pallas.
    if B < 8:
        bt = B
    else:
        bt = min(b_tile, (B // 8) * 8)
        # v7x megacore: make sure a big batch produces >= 2 grid steps so the
        # "parallel" axis can feed both TensorCores.
        if B >= 512 and pl.cdiv(B, bt) < 2:
            bt = _round_up(pl.cdiv(B, 2), 8)
    # VMEM ceiling: ~2.4 KB/row of f32/bf16 intermediates + double-buffered
    # f32 x/out tiles + ~70 KB resident bf16 weights.  bt<=2048 keeps the
    # footprint ~5 MB, inside v5e's 16 MiB scoped default and v7x's 64 MiB.
    assert bt <= 2048, "batch tile too large for v5e/v7x scoped-VMEM budget"

    grid = (pl.cdiv(B, bt),)

    resident = lambda a: pl.BlockSpec(a.shape, lambda i: (0,) * a.ndim)

    flops = 2 * B * (n_obs * H1 + H1 * H2 + H2 * n_actions)
    bytes_accessed = (B * n_obs * 4 + B * n_actions * 4          # x in, q out
                      + (n_obs * H1 + H1 * H2 + H2 * n_lane) * 2  # bf16 weights
                      + (H1 + H2 + n_actions) * 4)                # f32 biases
    cost = pl.CostEstimate(flops=flops, transcendentals=0,
                           bytes_accessed=bytes_accessed)

    out = pl.pallas_call(
        functools.partial(dqn_kernel, n_actions=n_actions),
        out_shape=jax.ShapeDtypeStruct((B, n_actions), jnp.float32),
        grid=grid,
        in_specs=[
            pl.BlockSpec((bt, n_obs), lambda i: (i, 0)),  # x: streamed f32 tiles
            resident(w1), resident(b1),                   # weights/biases stay
            resident(w2), resident(b2),                   # resident in VMEM
            resident(w3p), resident(b3),
        ],
        out_specs=pl.BlockSpec((bt, n_actions), lambda i: (i, 0)),
        compiler_params=pltpu.CompilerParams(
            dimension_semantics=("parallel",)),           # megacore on v7x
        cost_estimate=cost,
    )(x, w1, b1, w2, b2, w3p, b3)

    return out


def init_params(key, n_observations, n_actions):
    """Deterministic synthetic init (PyTorch-style uniform(-1/sqrt(fan_in), +))."""
    ks = jax.random.split(key, 6)

    def lin(kw, kb, fan_in, fan_out):
        bound = 1.0 / jnp.sqrt(fan_in)
        w = jax.random.uniform(kw, (fan_in, fan_out), jnp.float32, -bound, bound)
        b = jax.random.uniform(kb, (1, fan_out), jnp.float32, -bound, bound)
        return w, b

    w1, b1 = lin(ks[0], ks[1], n_observations, H1)
    w2, b2 = lin(ks[2], ks[3], H1, H2)
    w3, b3 = lin(ks[4], ks[5], H2, n_actions)
    return {"w1": w1, "b1": b1, "w2": w2, "b2": b2, "w3": w3, "b3": b3}


if __name__ == "__main__":
    key = jax.random.PRNGKey(0)
    n_observations, n_actions, batch = 8, 4, 2

    kx, kp = jax.random.split(key)
    x = jax.random.normal(kx, (batch, n_observations), dtype=jnp.float32)
    params = init_params(kp, n_observations, n_actions)

    q_values = dqn_forward(x, params)
    jax.block_until_ready(q_values)
    assert q_values.shape == (batch, n_actions)

    # Reference 1: plain-JAX mirror of the kernel's bf16/f32 mixed precision.
    xb = x.astype(jnp.bfloat16)
    w1b = params["w1"].astype(jnp.bfloat16)
    w2b = params["w2"].astype(jnp.bfloat16)
    w3b = params["w3"].astype(jnp.bfloat16)
    h1 = jnp.maximum(
        jnp.dot(xb, w1b, preferred_element_type=jnp.float32) + params["b1"], 0.0)
    h2 = jnp.maximum(
        jnp.dot(h1.astype(jnp.bfloat16), w2b,
                preferred_element_type=jnp.float32) + params["b2"], 0.0)
    ref_bf16 = jnp.dot(h2.astype(jnp.bfloat16), w3b,
                       preferred_element_type=jnp.float32) + params["b3"]
    assert jnp.allclose(q_values, ref_bf16, atol=2e-3, rtol=2e-3)

    # Reference 2: full-f32 PyTorch-equivalent forward (loose tolerance: the
    # kernel intentionally uses bf16 weights/activations on the MXU).
    h1f = jnp.maximum(x @ params["w1"] + params["b1"], 0.0)
    h2f = jnp.maximum(h1f @ params["w2"] + params["b2"], 0.0)
    ref_f32 = h2f @ params["w3"] + params["b3"]
    assert jnp.allclose(q_values, ref_f32, atol=5e-2, rtol=5e-2)

    # Larger, non-tile-aligned batch to exercise the partial last tile path.
    xb_big = jax.random.normal(jax.random.PRNGKey(1), (67, n_observations),
                               dtype=jnp.float32)
    q_big = dqn_forward(xb_big, params)
    jax.block_until_ready(q_big)
    h1g = jnp.maximum(xb_big @ params["w1"] + params["b1"], 0.0)
    h2g = jnp.maximum(h1g @ params["w2"] + params["b2"], 0.0)
    ref_big = h2g @ params["w3"] + params["b3"]
    assert q_big.shape == (67, n_actions)
    assert jnp.allclose(q_big, ref_big, atol=5e-2, rtol=5e-2)

    print("KERNEL_OK")
</pallas_src>

<mosaic_0001>
module attributes {stable_mosaic.version = 11 : i64} {
  func.func @dqn_kernel(%arg0: i32, %arg1: memref<2x8xf32, #tpu.memory_space<vmem>>, %arg2: memref<8x128xbf16, #tpu.memory_space<vmem>>, %arg3: memref<1x128xf32, #tpu.memory_space<vmem>>, %arg4: memref<128x256xbf16, #tpu.memory_space<vmem>>, %arg5: memref<1x256xf32, #tpu.memory_space<vmem>>, %arg6: memref<256x128xbf16, #tpu.memory_space<vmem>>, %arg7: memref<1x4xf32, #tpu.memory_space<vmem>>, %arg8: memref<2x4xf32, #tpu.memory_space<vmem>>) attributes {dimension_semantics = [#tpu.dimension_semantics<parallel>], iteration_bounds = array<i64: 1>, scalar_prefetch = 0 : i64, scratch_operands = 0 : i64, tpu.core_type = #tpu.core_type<tc>, window_params = [{transform_indices = @transform_0, window_bounds = array<i64: 2, 8>}, {pipeline_mode = #tpu.pipeline_mode<synchronous>, transform_indices = @transform_1, window_bounds = array<i64: 8, 128>}, {pipeline_mode = #tpu.pipeline_mode<synchronous>, transform_indices = @transform_2, window_bounds = array<i64: 1, 128>}, {pipeline_mode = #tpu.pipeline_mode<synchronous>, transform_indices = @transform_3, window_bounds = array<i64: 128, 256>}, {pipeline_mode = #tpu.pipeline_mode<synchronous>, transform_indices = @transform_4, window_bounds = array<i64: 1, 256>}, {pipeline_mode = #tpu.pipeline_mode<synchronous>, transform_indices = @transform_5, window_bounds = array<i64: 256, 128>}, {pipeline_mode = #tpu.pipeline_mode<synchronous>, transform_indices = @transform_6, window_bounds = array<i64: 1, 4>}, {transform_indices = @transform_7, window_bounds = array<i64: 2, 4>}]} {
    %c0 = arith.constant 0 : index
    %c0_0 = arith.constant 0 : index
    %0 = vector.load %arg1[%c0, %c0_0] : memref<2x8xf32, #tpu.memory_space<vmem>>, vector<2x8xf32>
    %1 = arith.truncf %0 : vector<2x8xf32> to vector<2x8xbf16>
    %c0_1 = arith.constant 0 : index
    %c0_2 = arith.constant 0 : index
    %2 = vector.load %arg2[%c0_1, %c0_2] : memref<8x128xbf16, #tpu.memory_space<vmem>>, vector<8x128xbf16>
    %cst = arith.constant dense<0.000000e+00> : vector<2x128xf32>
    %3 = tpu.matmul %1, %2, %cst {dimension_numbers = #tpu.dot_dimension_numbers<[1], [0], [0], [1], [0, 0, 1, 1], [], []>} : vector<2x8xbf16>, vector<8x128xbf16>, vector<2x128xf32> -> vector<2x128xf32>
    %c0_3 = arith.constant 0 : index
    %c0_4 = arith.constant 0 : index
    %4 = vector.load %arg3[%c0_3, %c0_4] : memref<1x128xf32, #tpu.memory_space<vmem>>, vector<1x128xf32>
    %5 = vector.broadcast %4 : vector<1x128xf32> to vector<2x128xf32>
    %6 = arith.addf %3, %5 : vector<2x128xf32>
    %cst_5 = arith.constant 0.000000e+00 : f32
    %7 = vector.broadcast %cst_5 : f32 to vector<2x128xf32>
    %8 = arith.maximumf %6, %7 : vector<2x128xf32>
    %9 = arith.truncf %8 : vector<2x128xf32> to vector<2x128xbf16>
    %c0_6 = arith.constant 0 : index
    %c0_7 = arith.constant 0 : index
    %10 = vector.load %arg4[%c0_6, %c0_7] : memref<128x256xbf16, #tpu.memory_space<vmem>>, vector<128x256xbf16>
    %cst_8 = arith.constant dense<0.000000e+00> : vector<2x256xf32>
    %11 = tpu.matmul %9, %10, %cst_8 {dimension_numbers = #tpu.dot_dimension_numbers<[1], [0], [0], [1], [0, 0, 1, 1], [], []>} : vector<2x128xbf16>, vector<128x256xbf16>, vector<2x256xf32> -> vector<2x256xf32>
    %c0_9 = arith.constant 0 : index
    %c0_10 = arith.constant 0 : index
    %12 = vector.load %arg5[%c0_9, %c0_10] : memref<1x256xf32, #tpu.memory_space<vmem>>, vector<1x256xf32>
    %13 = vector.broadcast %12 : vector<1x256xf32> to vector<2x256xf32>
    %14 = arith.addf %11, %13 : vector<2x256xf32>
    %cst_11 = arith.constant 0.000000e+00 : f32
    %15 = vector.broadcast %cst_11 : f32 to vector<2x256xf32>
    %16 = arith.maximumf %14, %15 : vector<2x256xf32>
    %17 = arith.truncf %16 : vector<2x256xf32> to vector<2x256xbf16>
    %c0_12 = arith.constant 0 : index
    %c0_13 = arith.constant 0 : index
    %18 = vector.load %arg6[%c0_12, %c0_13] : memref<256x128xbf16, #tpu.memory_space<vmem>>, vector<256x128xbf16>
    %cst_14 = arith.constant dense<0.000000e+00> : vector<2x128xf32>
    %19 = tpu.matmul %17, %18, %cst_14 {dimension_numbers = #tpu.dot_dimension_numbers<[1], [0], [0], [1], [0, 0, 1, 1], [], []>} : vector<2x256xbf16>, vector<256x128xbf16>, vector<2x128xf32> -> vector<2x128xf32>
    %20 = vector.extract_strided_slice %19 {offsets = [0, 0], sizes = [2, 4], strides = [1, 1]} : vector<2x128xf32> to vector<2x4xf32>
    %c0_15 = arith.constant 0 : index
    %c0_16 = arith.constant 0 : index
    %21 = vector.load %arg7[%c0_15, %c0_16] : memref<1x4xf32, #tpu.memory_space<vmem>>, vector<1x4xf32>
    %22 = vector.broadcast %21 : vector<1x4xf32> to vector<2x4xf32>
    %23 = arith.addf %20, %22 : vector<2x4xf32>
    %c0_17 = arith.constant 0 : index
    %c0_18 = arith.constant 0 : index
    %24 = vector.load %arg8[%c0_17, %c0_18] : memref<2x4xf32, #tpu.memory_space<vmem>>, vector<2x4xf32>
    tpu.vector_store %arg8[%c0_17, %c0_18], %23 {strides = array<i32>} : memref<2x4xf32, #tpu.memory_space<vmem>>, vector<2x4xf32>,
    return
  }
  func.func @transform_0(%arg0: i32) -> (i32, i32) {
    %c0_i32 = arith.constant 0 : i32
    %c0_i32_0 = arith.constant 0 : i32
    return %arg0, %c0_i32 : i32, i32
  }
  func.func @transform_1(%arg0: i32) -> (i32, i32) {
    %c0_i32 = arith.constant 0 : i32
    %c0_i32_0 = arith.constant 0 : i32
    %c0_i32_1 = arith.constant 0 : i32
    return %c0_i32, %c0_i32_0 : i32, i32
  }
  func.func @transform_2(%arg0: i32) -> (i32, i32) {
    %c0_i32 = arith.constant 0 : i32
    %c0_i32_0 = arith.constant 0 : i32
    %c0_i32_1 = arith.constant 0 : i32
    return %c0_i32, %c0_i32_0 : i32, i32
  }
  func.func @transform_3(%arg0: i32) -> (i32, i32) {
    %c0_i32 = arith.constant 0 : i32
    %c0_i32_0 = arith.constant 0 : i32
    %c0_i32_1 = arith.constant 0 : i32
    return %c0_i32, %c0_i32_0 : i32, i32
  }
  func.func @transform_4(%arg0: i32) -> (i32, i32) {
    %c0_i32 = arith.constant 0 : i32
    %c0_i32_0 = arith.constant 0 : i32
    %c0_i32_1 = arith.constant 0 : i32
    return %c0_i32, %c0_i32_0 : i32, i32
  }
  func.func @transform_5(%arg0: i32) -> (i32, i32) {
    %c0_i32 = arith.constant 0 : i32
    %c0_i32_0 = arith.constant 0 : i32
    %c0_i32_1 = arith.constant 0 : i32
    return %c0_i32, %c0_i32_0 : i32, i32
  }
  func.func @transform_6(%arg0: i32) -> (i32, i32) {
    %c0_i32 = arith.constant 0 : i32
    %c0_i32_0 = arith.constant 0 : i32
    %c0_i32_1 = arith.constant 0 : i32
    return %c0_i32, %c0_i32_0 : i32, i32
  }
  func.func @transform_7(%arg0: i32) -> (i32, i32) {
    %c0_i32 = arith.constant 0 : i32
    %c0_i32_0 = arith.constant 0 : i32
    return %arg0, %c0_i32 : i32, i32
  }
}

</mosaic_0001>

<llo_original>
// kernel: tpu_custom_call.1
$region0: #{tpu_custom_call.1}
  #allocation0 [shape = 'u32[]', space=smem, size = 0x4, offset = 0x4, fixed_abs, tag = 'smem constant byte address 0x4 - core index']
  #allocation1 [shape = 'u32[144,128]{1,0:T(1,128)}', space=vmem, size = 0x12000, scoped, tag = 'internal scratch']
  %s0 = inlined_call_operand.hbm [shape: f32[2,8], index: 0, kind: input, shape index: {}]
  %s1 = inlined_call_operand.hbm [shape: bf16[8,128], index: 1, kind: input, shape index: {}]
  %s2 = inlined_call_operand.vmem [shape: f32[1,128], index: 2, kind: input, shape index: {}]
  %s3 = inlined_call_operand.hbm [shape: bf16[128,256], index: 3, kind: input, shape index: {}]
  %s4 = inlined_call_operand.vmem [shape: f32[1,256], index: 4, kind: input, shape index: {}]
  %s5 = inlined_call_operand.hbm [shape: bf16[256,128], index: 5, kind: input, shape index: {}]
  %s6 = inlined_call_operand.vmem [shape: f32[1,4], index: 6, kind: input, shape index: {}]
  %s7 = inlined_call_operand.hbm [shape: f32[2,4], index: 7, kind: output, shape index: {}]
  %s8 = sld [smem:[#allocation0]]
  $region54: #{tpu_custom_call.1} parent=0
    _
  %s10 = ssub.s32 1, %s8
  %s11 = scalar_select 0, %s10, %s8
  $region1: #{tpu_custom_call.1} parent=0
    #allocation2 [shape = 'u8[1024]{0}', space=vmem, size = 0x400, scoped, tag = 'input window, operand 0, single buffered']
    #allocation3 [shape = 's32[1]{0}', space=sflag, size = 0x4, scoped, tag = 'scoped memory for tpu_custom_call.1']
    #allocation4 [shape = 's32[1]{0}', space=sflag, size = 0x4, scoped, tag = 'scoped memory for tpu_custom_call.1']
    #allocation5 [shape = 'u8[2048]{0}', space=vmem, size = 0x800, scoped, tag = 'input window, operand 1, single buffered']
    #allocation6 [shape = 's32[1]{0}', space=sflag, size = 0x4, scoped, tag = 'scoped memory for tpu_custom_call.1']
    #allocation7 [shape = 'u8[65536]{0}', space=vmem, size = 0x10000, scoped, tag = 'input window, operand 3, single buffered']
    #allocation8 [shape = 'u8[65536]{0}', space=vmem, size = 0x10000, scoped, tag = 'input window, operand 5, single buffered']
    #allocation9 [shape = 's32[1]{0}', space=sflag, size = 0x4, scoped, tag = 'scoped memory for tpu_custom_call.1']
    #allocation10 [shape = 'u8[1024]{0}', space=vmem, size = 0x400, scoped, tag = 'output window, operand 0, single buffered']
    %12 = vsyncpa [#allocation3], 0
    %13 = vsyncpa [#allocation6], 0
    %14 = vsyncpa [#allocation9], 0
    %15 = vsyncpa [#allocation4], 0
    // Predicated region
    $region2: #{tpu_custom_call.1} parent=1 // pred_check
      _
    $region3: #{tpu_custom_call.1} parent=1 // pred_check_branch
      %17 = sbr.rel (0) target = $region5
    $region4: #{tpu_custom_call.1} parent=1 // pred_region
      %s19 = ssub.s32 32, 32
      %20 = vsyncadd [#allocation3], %s19
      %s22 = sshll.u32 [#allocation2], 4
      %s23 = int_to_ptr.vmem [resolvable:$true] %s22
      %25 = dma.hbm_to_vmem [thread:$0]  %s0, 32, %s23, [#allocation3]
    $region5: #{tpu_custom_call.1} parent=1 // pred_fallthru
      _
    // Predicated region
    $region6: #{tpu_custom_call.1} parent=1 // pred_check
      _
    $region7: #{tpu_custom_call.1} parent=1 // pred_check_branch
      %27 = sbr.rel (0) target = $region9
    $region8: #{tpu_custom_call.1} parent=1 // pred_region
      %s29 = ssub.s32 64, 64
      %30 = vsyncadd [#allocation6], %s29
      %s32 = sshll.u32 [#allocation5], 4
      %s33 = int_to_ptr.vmem [resolvable:$true] %s32
      %35 = dma.hbm_to_vmem [thread:$0]  %s1, 64, %s33, [#allocation6]
    $region9: #{tpu_custom_call.1} parent=1 // pred_fallthru
      _
    // Predicated region
    $region10: #{tpu_custom_call.1} parent=1 // pred_check
      _
    $region11: #{tpu_custom_call.1} parent=1 // pred_check_branch
      %37 = sbr.rel (0) target = $region13
    $region12: #{tpu_custom_call.1} parent=1 // pred_region
      _
    $region13: #{tpu_custom_call.1} parent=1 // pred_fallthru
      _
    // Predicated region
    $region14: #{tpu_custom_call.1} parent=1 // pred_check
      _
    $region15: #{tpu_custom_call.1} parent=1 // pred_check_branch
      %39 = sbr.rel (0) target = $region17
    $region16: #{tpu_custom_call.1} parent=1 // pred_region
      %s41 = ssub.s32 2048, 2048
      %42 = vsyncadd [#allocation6], %s41
      %s43 = sshll.u32 [#allocation7], 4
      %s44 = int_to_ptr.vmem [resolvable:$true] %s43
      %49 = dma.hbm_to_vmem [thread:$0]  %s3, 2048, %s44, [#allocation6], 128, 128, 8
    $region17: #{tpu_custom_call.1} parent=1 // pred_fallthru
      _
    // Predicated region
    $region18: #{tpu_custom_call.1} parent=1 // pred_check
      _
    $region19: #{tpu_custom_call.1} parent=1 // pred_check_branch
      %51 = sbr.rel (0) target = $region21
    $region20: #{tpu_custom_call.1} parent=1 // pred_region
      _
    $region21: #{tpu_custom_call.1} parent=1 // pred_fallthru
      _
    // Predicated region
    $region22: #{tpu_custom_call.1} parent=1 // pred_check
      _
    $region23: #{tpu_custom_call.1} parent=1 // pred_check_branch
      %53 = sbr.rel (0) target = $region25
    $region24: #{tpu_custom_call.1} parent=1 // pred_region
      %s55 = ssub.s32 2048, 2048
      %56 = vsyncadd [#allocation9], %s55
      %s57 = sshll.u32 [#allocation8], 4
      %s58 = int_to_ptr.vmem [resolvable:$true] %s57
      %63 = dma.hbm_to_vmem [thread:$0]  %s5, 2048, %s58, [#allocation9], 64, 64, 4
    $region25: #{tpu_custom_call.1} parent=1 // pred_fallthru
      _
    // Predicated region
    $region26: #{tpu_custom_call.1} parent=1 // pred_check
      _
    $region27: #{tpu_custom_call.1} parent=1 // pred_check_branch
      %65 = sbr.rel (0) target = $region29
    $region28: #{tpu_custom_call.1} parent=1 // pred_region
      _
    $region29: #{tpu_custom_call.1} parent=1 // pred_fallthru
      _
    // Predicated region
    $region30: #{tpu_custom_call.1} parent=1 // pred_check
      _
    $region31: #{tpu_custom_call.1} parent=1 // pred_check_branch
      %67 = sbr.rel (0) target = $region33
    $region32: #{tpu_custom_call.1} parent=1 // pred_region
      %68 = dma.done [#allocation3], 32
    $region33: #{tpu_custom_call.1} parent=1 // pred_fallthru
      _
    // Predicated region
    $region34: #{tpu_custom_call.1} parent=1 // pred_check
      _
    $region35: #{tpu_custom_call.1} parent=1 // pred_check_branch
      %70 = sbr.rel (0) target = $region37
    $region36: #{tpu_custom_call.1} parent=1 // pred_region
      %71 = dma.done [#allocation6], 64
    $region37: #{tpu_custom_call.1} parent=1 // pred_fallthru
      _
    // Predicated region
    $region38: #{tpu_custom_call.1} parent=1 // pred_check
      _
    $region39: #{tpu_custom_call.1} parent=1 // pred_check_branch
      %73 = sbr.rel (0) target = $region41
    $region40: #{tpu_custom_call.1} parent=1 // pred_region
      %74 = dma.done [#allocation6], 2048
    $region41: #{tpu_custom_call.1} parent=1 // pred_fallthru
      _
    // Predicated region
    $region42: #{tpu_custom_call.1} parent=1 // pred_check
      _
    $region43: #{tpu_custom_call.1} parent=1 // pred_check_branch
      %76 = sbr.rel (0) target = $region45
    $region44: #{tpu_custom_call.1} parent=1 // pred_region
      %77 = dma.done [#allocation9], 2048
    $region45: #{tpu_custom_call.1} parent=1 // pred_fallthru
      _
    %v79 = vld [vmem:[#allocation2] sm:$0x3]
    %v80 = vpack.c.bf16 %v79, %v79
    %v81 = vld [vmem:[#allocation5] sm:$0xf]
    %v82 = vld [vmem:[%s2] sm:$0x1]
    %v84 = vlaneseq
    %v85 = vshrl.u32 %v84, 7
    %v86 = vsub.s32 0, %v85
    %v87 = vrot.slane %v82, %v86
    %vm89 = vcmask 64512
    %v91 = vsel %vm89, %v80, 0
    %vm93 = vcmask 1043456
    %v95 = vsel %vm93, %v81, 0
    %97 = vmatprep.subr.bf16.mxu0 0
    %98 = vmatpush1.bf16.msra.mxu0 0
    %99 = vmatprep.subr.bf16.mxu0 0
    %100 = vmatpush1.bf16.msra.mxu0 0
    %101 = vmatprep.subr.bf16.mxu0 0
    %102 = vmatpush1.bf16.msra.mxu0 0
    %103 = vmatprep.subr.bf16.mxu0 0
    %104 = vmatpush1.bf16.msra.mxu0 0
    %105 = vmatprep.subr.bf16.mxu0 0
    %106 = vmatpush1.bf16.msra.mxu0 0
    %107 = vmatprep.subr.bf16.mxu0 0
    %108 = vmatpush1.bf16.msra.mxu0 0
    %109 = vmatprep.subr.bf16.mxu0 0
    %110 = vmatpush1.bf16.msra.mxu0 0
    %111 = vmatprep.subr.bf16.mxu0 0
    %112 = vmatpush1.bf16.msra.mxu0 %v95
    %113 = vmatprep.subr.bf16.mxu0 0
    %114 = vmatpush2.bf16.msra.mxu0 0
    %115 = vmatprep.subr.bf16.mxu0 0
    %116 = vmatpush2.bf16.msra.mxu0 0
    %117 = vmatprep.subr.bf16.mxu0 0
    %118 = vmatpush2.bf16.msra.mxu0 0
    %119 = vmatprep.subr.bf16.mxu0 0
    %120 = vmatpush2.bf16.msra.mxu0 0
    %121 = vmatprep.subr.bf16.mxu0 0
    %122 = vmatpush2.bf16.msra.mxu0 0
    %123 = vmatprep.subr.bf16.mxu0 0
    %124 = vmatpush2.bf16.msra.mxu0 0
    %125 = vmatprep.subr.bf16.mxu0 0
    %126 = vmatpush2.bf16.msra.mxu0 0
    %127 = vmatprep.subr.bf16.mxu0 0
    %128 = vmatpush2.bf16.msra.mxu0 0
    %129 = vmatprep.mubr.bf16.mxu0 0
    %130 = vmatmul.mubr.bf16.gmra.mxu0 %v91
    %v131 = vpop.f32.mrf.mxu0
    %v132 = vadd.f32 %v87, %v131
    %v133 = vpop.f32.mrf.mxu0
    %v134 = vpop.f32.mrf.mxu0
    %v135 = vpop.f32.mrf.mxu0
    %136 = vdwg.mxu0
    %v137 = vmax.f32 %v132, 0.0
    %v138 = vpack.c.bf16 %v137, %v137
    %v139 = vld [vmem:[#allocation7] sm:$0xff]
    %v140 = vld [vmem:[#allocation7 + $0x8] sm:$0xff]
    %v141 = vld [vmem:[#allocation7 + $0x10] sm:$0xff]
    %v142 = vld [vmem:[#allocation7 + $0x18] sm:$0xff]
    %v143 = vld [vmem:[#allocation7 + $0x20] sm:$0xff]
    %v144 = vld [vmem:[#allocation7 + $0x28] sm:$0xff]
    %v145 = vld [vmem:[#allocation7 + $0x30] sm:$0xff]
    %v146 = vld [vmem:[#allocation7 + $0x38] sm:$0xff]
    %v147 = vld [vmem:[#allocation7 + $0x40] sm:$0xff]
    %v148 = vld [vmem:[#allocation7 + $0x48] sm:$0xff]
    %v149 = vld [vmem:[#allocation7 + $0x50] sm:$0xff]
    %v150 = vld [vmem:[#allocation7 + $0x58] sm:$0xff]
    %v151 = vld [vmem:[#allocation7 + $0x60] sm:$0xff]
    %v152 = vld [vmem:[#allocation7 + $0x68] sm:$0xff]
    %v153 = vld [vmem:[#allocation7 + $0x70] sm:$0xff]
    %v154 = vld [vmem:[#allocation7 + $0x78] sm:$0xff]
    %v155 = vld [vmem:[%s4] sm:$0x3]
    %v157 = vlaneseq
    %v158 = vshrl.u32 %v157, 7
    %v159 = vsub.s32 0, %v158
    %v160 = vrot.slane %v155, %v159
    %v161 = vlaneseq
    %v162 = vshrl.u32 %v161, 7
    %v163 = vsub.s32 1, %v162
    %v164 = vrot.slane %v155, %v163
    %v183 = vunpack.c.l.b16 %v139
    %v184 = vunpack.c.h.b16 %v139
    %v185 = vunpack.c.l.b16 %v140
    %v186 = vunpack.c.h.b16 %v140
    %v187 = vunpack.c.l.b16 %v141
    %v188 = vunpack.c.h.b16 %v141
    %v189 = vunpack.c.l.b16 %v142
    %v190 = vunpack.c.h.b16 %v142
    %v191 = vunpack.c.l.b16 %v143
    %v192 = vunpack.c.h.b16 %v143
    %v193 = vunpack.c.l.b16 %v144
    %v194 = vunpack.c.h.b16 %v144
    %v195 = vunpack.c.l.b16 %v145
    %v196 = vunpack.c.h.b16 %v145
    %v197 = vunpack.c.l.b16 %v146
    %v198 = vunpack.c.h.b16 %v146
    %v199 = vunpack.c.l.b16 %v147
    %v200 = vunpack.c.h.b16 %v147
    %v201 = vunpack.c.l.b16 %v148
    %v202 = vunpack.c.h.b16 %v148
    %v203 = vunpack.c.l.b16 %v149
    %v204 = vunpack.c.h.b16 %v149
    %v205 = vunpack.c.l.b16 %v150
    %v206 = vunpack.c.h.b16 %v150
    %v207 = vunpack.c.l.b16 %v151
    %v208 = vunpack.c.h.b16 %v151
    %v209 = vunpack.c.l.b16 %v152
    %v210 = vunpack.c.h.b16 %v152
    %v211 = vunpack.c.l.b16 %v153
    %v212 = vunpack.c.h.b16 %v153
    %v213 = vunpack.c.l.b16 %v154
    %v214 = vunpack.c.h.b16 %v154
    %v215 = vpack.c.b16 %v185, %v183
    %v216 = vpack.c.b16 %v186, %v184
    %v217 = vpack.c.b16 %v189, %v187
    %v218 = vpack.c.b16 %v190, %v188
    %v219 = vpack.c.b16 %v193, %v191
    %v220 = vpack.c.b16 %v194, %v192
    %v221 = vpack.c.b16 %v197, %v195
    %v222 = vpack.c.b16 %v198, %v196
    %v223 = vpack.c.b16 %v201, %v199
    %v224 = vpack.c.b16 %v202, %v200
    %v225 = vpack.c.b16 %v205, %v203
    %v226 = vpack.c.b16 %v206, %v204
    %v227 = vpack.c.b16 %v209, %v207
    %v228 = vpack.c.b16 %v210, %v208
    %v229 = vpack.c.b16 %v213, %v211
    %v230 = vpack.c.b16 %v214, %v212
    %247 = vmatprep.subr.bf16.mxu0 %v230
    %248 = vmatpush1.bf16.msra.mxu0 %v229
    %249 = vmatprep.subr.bf16.mxu0 %v228
    %250 = vmatpush1.bf16.msra.mxu0 %v227
    %251 = vmatprep.subr.bf16.mxu0 %v226
    %252 = vmatpush1.bf16.msra.mxu0 %v225
    %253 = vmatprep.subr.bf16.mxu0 %v224
    %254 = vmatpush1.bf16.msra.mxu0 %v223
    %255 = vmatprep.subr.bf16.mxu0 %v222
    %256 = vmatpush1.bf16.msra.mxu0 %v221
    %257 = vmatprep.subr.bf16.mxu0 %v220
    %258 = vmatpush1.bf16.msra.mxu0 %v219
    %259 = vmatprep.subr.bf16.mxu0 %v218
    %260 = vmatpush1.bf16.msra.mxu0 %v217
    %261 = vmatprep.subr.bf16.mxu0 %v216
    %262 = vmatpush1.bf16.msra.mxu0 %v215
    %263 = vmatprep.subr.bf16.mxu0 0
    %264 = vmatpush2.bf16.msra.mxu0 0
    %265 = vmatprep.subr.bf16.mxu0 0
    %266 = vmatpush2.bf16.msra.mxu0 0
    %267 = vmatprep.subr.bf16.mxu0 0
    %268 = vmatpush2.bf16.msra.mxu0 0
    %269 = vmatprep.subr.bf16.mxu0 0
    %270 = vmatpush2.bf16.msra.mxu0 0
    %271 = vmatprep.subr.bf16.mxu0 0
    %272 = vmatpush2.bf16.msra.mxu0 0
    %273 = vmatprep.subr.bf16.mxu0 0
    %274 = vmatpush2.bf16.msra.mxu0 0
    %275 = vmatprep.subr.bf16.mxu0 0
    %276 = vmatpush2.bf16.msra.mxu0 0
    %277 = vmatprep.subr.bf16.mxu0 0
    %278 = vmatpush2.bf16.msra.mxu0 0
    %279 = vmatprep.mubr.bf16.mxu0 0
    %280 = vmatmul.mubr.bf16.gmra.mxu0 %v138
    %v281 = vpop.f32.mrf.mxu0
    %v282 = vadd.f32 %v160, %v281
    %v283 = vpop.f32.mrf.mxu0
    %v284 = vadd.f32 %v164, %v283
    %v285 = vpop.f32.mrf.mxu0
    %v286 = vpop.f32.mrf.mxu0
    %287 = vdwg.mxu0
    %v288 = vmax.f32 %v282, 0.0
    %v289 = vmax.f32 %v284, 0.0
    %v290 = vpack.c.bf16 %v288, %v288
    %v291 = vpack.c.bf16 %v289, %v289
    %v292 = vld [vmem:[#allocation8] sm:$0xf]
    %v293 = vld [vmem:[#allocation8 + $0x4] sm:$0xf]
    %v294 = vld [vmem:[#allocation8 + $0x8] sm:$0xf]
    %v295 = vld [vmem:[#allocation8 + $0xc] sm:$0xf]
    %v296 = vld [vmem:[#allocation8 + $0x10] sm:$0xf]
    %v297 = vld [vmem:[#allocation8 + $0x14] sm:$0xf]
    %v298 = vld [vmem:[#allocation8 + $0x18] sm:$0xf]
    %v299 = vld [vmem:[#allocation8 + $0x1c] sm:$0xf]
    %v300 = vld [vmem:[#allocation8 + $0x20] sm:$0xf]
    %v301 = vld [vmem:[#allocation8 + $0x24] sm:$0xf]
    %v302 = vld [vmem:[#allocation8 + $0x28] sm:$0xf]
    %v303 = vld [vmem:[#allocation8 + $0x2c] sm:$0xf]
    %v304 = vld [vmem:[#allocation8 + $0x30] sm:$0xf]
    %v305 = vld [vmem:[#allocation8 + $0x34] sm:$0xf]
    %v306 = vld [vmem:[#allocation8 + $0x38] sm:$0xf]
    %v307 = vld [vmem:[#allocation8 + $0x3c] sm:$0xf]
    %v308 = vld [vmem:[#allocation8 + $0x40] sm:$0xf]
    %v309 = vld [vmem:[#allocation8 + $0x44] sm:$0xf]
    %v310 = vld [vmem:[#allocation8 + $0x48] sm:$0xf]
    %v311 = vld [vmem:[#allocation8 + $0x4c] sm:$0xf]
    %v312 = vld [vmem:[#allocation8 + $0x50] sm:$0xf]
    %v313 = vld [vmem:[#allocation8 + $0x54] sm:$0xf]
    %v314 = vld [vmem:[#allocation8 + $0x58] sm:$0xf]
    %v315 = vld [vmem:[#allocation8 + $0x5c] sm:$0xf]
    %v316 = vld [vmem:[#allocation8 + $0x60] sm:$0xf]
    %v317 = vld [vmem:[#allocation8 + $0x64] sm:$0xf]
    %v318 = vld [vmem:[#allocation8 + $0x68] sm:$0xf]
    %v319 = vld [vmem:[#allocation8 + $0x6c] sm:$0xf]
    %v320 = vld [vmem:[#allocation8 + $0x70] sm:$0xf]
    %v321 = vld [vmem:[#allocation8 + $0x74] sm:$0xf]
    %v322 = vld [vmem:[#allocation8 + $0x78] sm:$0xf]
    %v323 = vld [vmem:[#allocation8 + $0x7c] sm:$0xf]
    %v356 = vunpack.c.l.b16 %v292
    %v357 = vunpack.c.l.b16 %v293
    %v358 = vunpack.c.l.b16 %v294
    %v359 = vunpack.c.l.b16 %v295
    %v360 = vunpack.c.l.b16 %v296
    %v361 = vunpack.c.l.b16 %v297
    %v362 = vunpack.c.l.b16 %v298
    %v363 = vunpack.c.l.b16 %v299
    %v364 = vunpack.c.l.b16 %v300
    %v365 = vunpack.c.l.b16 %v301
    %v366 = vunpack.c.l.b16 %v302
    %v367 = vunpack.c.l.b16 %v303
    %v368 = vunpack.c.l.b16 %v304
    %v369 = vunpack.c.l.b16 %v305
    %v370 = vunpack.c.l.b16 %v306
    %v371 = vunpack.c.l.b16 %v307
    %v372 = vunpack.c.l.b16 %v308
    %v373 = vunpack.c.l.b16 %v309
    %v374 = vunpack.c.l.b16 %v310
    %v375 = vunpack.c.l.b16 %v311
    %v376 = vunpack.c.l.b16 %v312
    %v377 = vunpack.c.l.b16 %v313
    %v378 = vunpack.c.l.b16 %v314
    %v379 = vunpack.c.l.b16 %v315
    %v380 = vunpack.c.l.b16 %v316
    %v381 = vunpack.c.l.b16 %v317
    %v382 = vunpack.c.l.b16 %v318
    %v383 = vunpack.c.l.b16 %v319
    %v384 = vunpack.c.l.b16 %v320
    %v385 = vunpack.c.l.b16 %v321
    %v386 = vunpack.c.l.b16 %v322
    %v387 = vunpack.c.l.b16 %v323
    %v388 = vpack.c.b16 %v357, %v356
    %v389 = vpack.c.b16 %v359, %v358
    %v390 = vpack.c.b16 %v361, %v360
    %v391 = vpack.c.b16 %v363, %v362
    %v392 = vpack.c.b16 %v365, %v364
    %v393 = vpack.c.b16 %v367, %v366
    %v394 = vpack.c.b16 %v369, %v368
    %v395 = vpack.c.b16 %v371, %v370
    %v396 = vpack.c.b16 %v373, %v372
    %v397 = vpack.c.b16 %v375, %v374
    %v398 = vpack.c.b16 %v377, %v376
    %v399 = vpack.c.b16 %v379, %v378
    %v400 = vpack.c.b16 %v381, %v380
    %v401 = vpack.c.b16 %v383, %v382
    %v402 = vpack.c.b16 %v385, %v384
    %v403 = vpack.c.b16 %v387, %v386
    %420 = vmatprep.subr.bf16.mxu0 0
    %421 = vmatpush1.bf16.msra.mxu0 %v395
    %422 = vmatprep.subr.bf16.mxu0 0
    %423 = vmatpush1.bf16.msra.mxu0 %v394
    %424 = vmatprep.subr.bf16.mxu0 0
    %425 = vmatpush1.bf16.msra.mxu0 %v393
    %426 = vmatprep.subr.bf16.mxu0 0
    %427 = vmatpush1.bf16.msra.mxu0 %v392
    %428 = vmatprep.subr.bf16.mxu0 0
    %429 = vmatpush1.bf16.msra.mxu0 %v391
    %430 = vmatprep.subr.bf16.mxu0 0
    %431 = vmatpush1.bf16.msra.mxu0 %v390
    %432 = vmatprep.subr.bf16.mxu0 0
    %433 = vmatpush1.bf16.msra.mxu0 %v389
    %434 = vmatprep.subr.bf16.mxu0 0
    %435 = vmatpush1.bf16.msra.mxu0 %v388
    %436 = vmatprep.subr.bf16.mxu0 0
    %437 = vmatpush2.bf16.msra.mxu0 %v403
    %438 = vmatprep.subr.bf16.mxu0 0
    %439 = vmatpush2.bf16.msra.mxu0 %v402
    %440 = vmatprep.subr.bf16.mxu0 0
    %441 = vmatpush2.bf16.msra.mxu0 %v401
    %442 = vmatprep.subr.bf16.mxu0 0
    %443 = vmatpush2.bf16.msra.mxu0 %v400
    %444 = vmatprep.subr.bf16.mxu0 0
    %445 = vmatpush2.bf16.msra.mxu0 %v399
    %446 = vmatprep.subr.bf16.mxu0 0
    %447 = vmatpush2.bf16.msra.mxu0 %v398
    %448 = vmatprep.subr.bf16.mxu0 0
    %449 = vmatpush2.bf16.msra.mxu0 %v397
    %450 = vmatprep.subr.bf16.mxu0 0
    %451 = vmatpush2.bf16.msra.mxu0 %v396
    %452 = vmatprep.mubr.bf16.mxu0 %v291
    %453 = vmatmul.mubr.bf16.gmra.mxu0 %v290
    %v454 = vpop.f32.mrf.mxu0
    %v455 = vadd.f32 0.0, %v454
    %v456 = vpop.f32.mrf.mxu0
    %v457 = vpop.f32.mrf.mxu0
    %v458 = vpop.f32.mrf.mxu0
    %459 = vdwg.mxu0
    %v460 = vld [vmem:[%s6] sm:$0x1]
    %v462 = vlaneseq
    %v463 = vshrl.u32 %v462, 7
    %v464 = vsub.s32 0, %v463
    %v465 = vrot.slane %v460, %v464
    %v467 = vadd.f32 %v455, %v465
    %vm468 = vcmask 25600
    %469 = vst.msk [vmem:[#allocation10] sm:$0x3] %vm468, %v467
    // Predicated region
    $region46: #{tpu_custom_call.1} parent=1 // pred_check
      _
    $region47: #{tpu_custom_call.1} parent=1 // pred_check_branch
      %471 = sbr.rel (0) target = $region49
    $region48: #{tpu_custom_call.1} parent=1 // pred_region
      %s473 = ssub.s32 32, 32
      %474 = vsyncadd [#allocation4], %s473
      %s476 = sshll.u32 [#allocation10], 4
      %s477 = int_to_ptr.vmem [resolvable:$true] %s476
      %479 = dma.vmem_to_hbm [thread:$0]  %s477, 32, %s7, [#allocation4]
    $region49: #{tpu_custom_call.1} parent=1 // pred_fallthru
      _
    // Predicated region
    $region50: #{tpu_custom_call.1} parent=1 // pred_check
      _
    $region51: #{tpu_custom_call.1} parent=1 // pred_check_branch
      %481 = sbr.rel (0) target = $region53
    $region52: #{tpu_custom_call.1} parent=1 // pred_region
      %482 = dma.done [#allocation4], 32
    $region53: #{tpu_custom_call.1} parent=1 // pred_fallthru
      _
    %483 = vsyncpa [#allocation3], 1
    %484 = vsyncpa [#allocation6], 1
    %485 = vsyncpa [#allocation9], 1
    %486 = vsyncpa [#allocation4], 1

</llo_original>
